<compile_context>
chip_gen: v6e
topology: v6e:2x2x1
jax: 0.10.0
libtpu: 0.0.40
codegen_flags: <defaults>
</compile_context>

<pallas_src>
import functools

import jax
import jax.numpy as jnp
from jax.experimental import pallas as pl
from jax.experimental.pallas import tpu as pltpu

_MB = 1024 * 1024


def _round_up(x, m):
    return (x + m - 1) // m * m


def _cdiv(a, b):
    return (a + b - 1) // b


# ----------------------------------------------------------------------------
# Kernels
# ----------------------------------------------------------------------------
def _ffn_resident_kernel(x_ref, w1_ref, b1_ref, w2_ref, b2_ref, o_ref):
    # One row tile, full FFN; W1/W2/b1/b2 stay resident in VMEM across tiles.
    x = x_ref[...].astype(w1_ref.dtype)
    h = jnp.dot(x, w1_ref[...], preferred_element_type=jnp.float32)
    h = jnp.maximum(h + b1_ref[...], 0.0)                         # ReLU
    # TODO(synk): dropout is inference-mode identity (no RNG mask / 1/(1-p) scale).
    y = jnp.dot(h.astype(w2_ref.dtype), w2_ref[...],
                preferred_element_type=jnp.float32)
    o_ref[...] = (y + b2_ref[...]).astype(o_ref.dtype)


def _ffn_reduction_kernel(x_ref, w1_ref, b1_ref, w2_ref, b2_ref, o_ref, acc_ref):
    # Grid: (row tiles, P chunks).  acc_ref accumulates over the P axis.
    k = pl.program_id(1)

    @pl.when(k == 0)
    def _():
        acc_ref[...] = jnp.zeros_like(acc_ref)

    x = x_ref[...].astype(w1_ref.dtype)
    h = jnp.dot(x, w1_ref[...], preferred_element_type=jnp.float32)
    h = jnp.maximum(h + b1_ref[...], 0.0)                         # ReLU
    # TODO(synk): dropout is inference-mode identity (no RNG mask / 1/(1-p) scale).
    acc_ref[...] += jnp.dot(h.astype(w2_ref.dtype), w2_ref[...],
                            preferred_element_type=jnp.float32)

    @pl.when(k == pl.num_programs(1) - 1)
    def _():
        o_ref[...] = (acc_ref[...] + b2_ref[...]).astype(o_ref.dtype)


# ----------------------------------------------------------------------------
# Generation-aware configuration
# ----------------------------------------------------------------------------
def _tpu_config():
    """Returns (default row tile, VMEM budget in bytes) for the local TPU."""
    kind = ""
    try:
        kind = jax.devices()[0].device_kind.lower()
    except Exception:
        pass
    vmem_phys = None
    try:
        vmem_phys = int(pltpu.get_tpu_info().vmem_capacity_bytes)
    except Exception:
        pass
    if "v5 lite" in kind or "v5e" in kind or "v5lite" in kind:
        tm, phys = 256, 128 * _MB          # roofline knee ~240 FLOPs/byte
    elif "v6" in kind:
        tm, phys = 1024, 128 * _MB         # knee ~675 FLOPs/byte (bf16)
    elif "v7" in kind or "7x" in kind:
        tm, phys = 512, 64 * _MB           # per-TC knee ~311 FLOPs/byte
    elif "v4" in kind or "v5" in kind:     # v4 / v5p
        tm, phys = 512, 128 * _MB
    else:
        tm, phys = 512, 64 * _MB           # conservative default
    if vmem_phys:
        phys = vmem_phys
    # Never request all of physical VMEM: leave room for Mosaic internal scratch.
    cap = max(min(phys - 12 * _MB, 110 * _MB), 16 * _MB)
    return tm, cap


def _resident_vmem_bytes(tm, h_pad, p_pad, x_isz, c_isz):
    return (2 * tm * h_pad * x_isz            # x tiles (double-buffered)
            + 2 * tm * h_pad * x_isz          # out tiles
            + 2 * 2 * h_pad * p_pad * c_isz   # W1 + W2 (2 pipeline buffers each)
            + 2 * (p_pad + h_pad) * 4         # biases (f32)
            + tm * p_pad * 4                  # h intermediate (f32)
            + tm * h_pad * 4)                 # second matmul result (f32)


def _reduction_vmem_bytes(tm, tp, h_pad, x_isz, c_isz):
    return (2 * tm * h_pad * x_isz            # x tiles
            + 2 * tm * h_pad * x_isz          # out tiles
            + 2 * 2 * h_pad * tp * c_isz      # W1 chunk + W2 chunk
            + 2 * (tp + h_pad) * 4            # bias chunks (f32)
            + tm * h_pad * 4                  # f32 accumulator scratch
            + tm * tp * 4                     # h intermediate (f32)
            + tm * h_pad * 4)                 # partial second matmul (f32)


# ----------------------------------------------------------------------------
# Wrapper
# ----------------------------------------------------------------------------
@functools.partial(jax.jit, static_argnames=("tm", "tp", "compute_dtype"))
def positionwise_feedforward(x, w1, b1, w2, b2, *, tm=None, tp=512,
                             compute_dtype=jnp.bfloat16):
    """x: (B, L, hid_dim) -> (B, L, hid_dim).

    w1: (hid_dim, pf_dim)  == torch fc_1.weight[:, :, 0].T
    w2: (pf_dim, hid_dim)  == torch fc_2.weight[:, :, 0].T
    """
    B, L, H = x.shape
    P = w1.shape[1]
    M = B * L
    x_isz = jnp.dtype(x.dtype).itemsize
    c_isz = jnp.dtype(compute_dtype).itemsize

    tm_default, vmem_cap = _tpu_config()
    if tm is None:
        tm = tm_default
    headroom = 4 * _MB

    H_pad = _round_up(H, 128)      # lane-dense feature axis (full vst stores)
    P_pad = _round_up(P, 128)

    # Row tiling: one full-row block for small problems, otherwise a
    # multiple-of-8 tile with a ragged (masked) last grid step -- no M padding.
    if M <= tm:
        tm_eff = M
    else:
        tm_eff = max(8, tm // 8 * 8)
    num_row_tiles = _cdiv(M, tm_eff)

    # Path selection: keep the full weights resident in VMEM when they fit.
    resident = (_resident_vmem_bytes(tm_eff, H_pad, P_pad, x_isz, c_isz)
                + headroom <= vmem_cap)

    tp_eff = None
    if resident:
        P_use = P_pad
    else:
        tp_eff = max(128, min(tp, P_pad) // 128 * 128)
        while (tp_eff > 128 and
               _reduction_vmem_bytes(tm_eff, tp_eff, H_pad, x_isz, c_isz)
               + headroom > vmem_cap):
            tp_eff = max(128, (tp_eff // 2) // 128 * 128)
        while (tm_eff > 128 and
               _reduction_vmem_bytes(tm_eff, tp_eff, H_pad, x_isz, c_isz)
               + headroom > vmem_cap):
            tm_eff = max(128, (tm_eff // 2) // 8 * 8)
        num_row_tiles = _cdiv(M, tm_eff)
        P_use = _round_up(P, tp_eff)

    # Activations: pad only when the feature axis is not already 128-aligned.
    x2 = x.reshape(M, H)
    if H_pad != H:
        x2 = jnp.pad(x2, ((0, 0), (0, H_pad - H)))

    # Weights / biases: zero-pad (exact) and cast weights to the MXU dtype.
    w1p = jnp.pad(w1, ((0, H_pad - H), (0, P_use - P))).astype(compute_dtype)
    w2p = jnp.pad(w2, ((0, P_use - P), (0, H_pad - H))).astype(compute_dtype)
    b1r = jnp.pad(b1.reshape(1, P), ((0, 0), (0, P_use - P))).astype(jnp.float32)
    b2r = jnp.pad(b2.reshape(1, H), ((0, 0), (0, H_pad - H))).astype(jnp.float32)

    # Honest cost estimate (weights re-streamed per row tile on reduction path).
    flops = 4 * M * H_pad * P_use
    w_stream = 2 * H_pad * P_use * c_isz
    if not resident:
        w_stream *= num_row_tiles
    bytes_accessed = 2 * M * H_pad * x_isz + w_stream

    if resident:
        kernel = _ffn_resident_kernel
        grid = (num_row_tiles,)
        in_specs = [
            pl.BlockSpec((tm_eff, H_pad), lambda i: (i, 0)),      # x row tile
            pl.BlockSpec((H_pad, P_use), lambda i: (0, 0)),       # W1 (resident)
            pl.BlockSpec((1, P_use), lambda i: (0, 0)),           # b1 (resident)
            pl.BlockSpec((P_use, H_pad), lambda i: (0, 0)),       # W2 (resident)
            pl.BlockSpec((1, H_pad), lambda i: (0, 0)),           # b2 (resident)
        ]
        out_specs = pl.BlockSpec((tm_eff, H_pad), lambda i: (i, 0))
        scratch_shapes = []
        dim_sem = ("parallel",)
    else:
        kernel = _ffn_reduction_kernel
        grid = (num_row_tiles, P_use // tp_eff)
        in_specs = [
            pl.BlockSpec((tm_eff, H_pad), lambda i, k: (i, 0)),   # x row tile
            pl.BlockSpec((H_pad, tp_eff), lambda i, k: (0, k)),   # W1 chunk
            pl.BlockSpec((1, tp_eff), lambda i, k: (0, k)),       # b1 chunk
            pl.BlockSpec((tp_eff, H_pad), lambda i, k: (k, 0)),   # W2 chunk
            pl.BlockSpec((1, H_pad), lambda i, k: (0, 0)),        # b2
        ]
        out_specs = pl.BlockSpec((tm_eff, H_pad), lambda i, k: (i, 0))
        scratch_shapes = [pltpu.VMEM((tm_eff, H_pad), jnp.float32)]
        dim_sem = ("parallel", "arbitrary")

    out = pl.pallas_call(
        kernel,
        out_shape=jax.ShapeDtypeStruct((M, H_pad), x.dtype),
        grid_spec=pltpu.PrefetchScalarGridSpec(
            num_scalar_prefetch=0,
            grid=grid,
            in_specs=in_specs,
            out_specs=out_specs,
            scratch_shapes=scratch_shapes,
        ),
        compiler_params=pltpu.CompilerParams(
            dimension_semantics=dim_sem,
            vmem_limit_bytes=int(vmem_cap)),
        cost_estimate=pl.CostEstimate(
            flops=int(flops), transcendentals=0,
            bytes_accessed=int(bytes_accessed)),
    )(x2, w1p, b1r, w2p, b2r)

    if H_pad != H:
        out = out[:, :H]
    return out.reshape(B, L, H)


def _xavier_uniform(key, fan_in, fan_out, shape, dtype=jnp.float32):
    bound = (6.0 / (fan_in + fan_out)) ** 0.5
    return jax.random.uniform(key, shape, dtype, minval=-bound, maxval=bound)


if __name__ == "__main__":
    # Small shapes consistent with the module's forward: x is (B, L, hid_dim).
    B, L, hid_dim, pf_dim = 2, 8, 32, 64

    key = jax.random.PRNGKey(0)
    kx, k1, k2, kb1, kb2 = jax.random.split(key, 5)

    x = jax.random.normal(kx, (B, L, hid_dim), dtype=jnp.float32)

    # Conv1d(hid, pf, 1) weight is (pf, hid, 1) in torch; stored transposed as
    # (hid, pf) so the kernel computes x @ W1.  Xavier-uniform weights.  The
    # module inits biases to 0; small nonzero biases exercise the bias-add path.
    w1 = _xavier_uniform(k1, hid_dim, pf_dim, (hid_dim, pf_dim))
    b1 = 0.01 * jax.random.normal(kb1, (pf_dim,), jnp.float32)
    w2 = _xavier_uniform(k2, pf_dim, hid_dim, (pf_dim, hid_dim))
    b2 = 0.01 * jax.random.normal(kb2, (hid_dim,), jnp.float32)

    y = positionwise_feedforward(x, w1, b1, w2, b2)
    y = jax.block_until_ready(y)
    assert y.shape == (B, L, hid_dim)

    x2 = x.reshape(-1, hid_dim)

    # Mixed-precision reference (bf16 MXU matmuls, f32 accumulation): should
    # match the kernel tightly.
    h_ref = jnp.dot(x2.astype(jnp.bfloat16), w1.astype(jnp.bfloat16),
                    preferred_element_type=jnp.float32)
    h_ref = jnp.maximum(h_ref + b1, 0.0)
    y_ref = jnp.dot(h_ref.astype(jnp.bfloat16), w2.astype(jnp.bfloat16),
                    preferred_element_type=jnp.float32) + b2
    y_ref = y_ref.reshape(B, L, hid_dim)
    assert jnp.allclose(y, y_ref, atol=2e-3, rtol=2e-3)

    # Pure-f32 reference (PyTorch eval-mode forward); looser tolerance for the
    # bf16 matmul path.
    f32_ref = (jnp.maximum(x2 @ w1 + b1, 0.0) @ w2 + b2).reshape(B, L, hid_dim)
    assert jnp.allclose(y, f32_ref, atol=5e-2, rtol=5e-2)

    print("KERNEL_OK")
</pallas_src>

<mosaic_0001>
module attributes {stable_mosaic.version = 11 : i64} {
  func.func @_ffn_resident_kernel(%arg0: i32, %arg1: memref<16x128xf32, #tpu.memory_space<vmem>>, %arg2: memref<128x128xbf16, #tpu.memory_space<vmem>>, %arg3: memref<1x128xf32, #tpu.memory_space<vmem>>, %arg4: memref<128x128xbf16, #tpu.memory_space<vmem>>, %arg5: memref<1x128xf32, #tpu.memory_space<vmem>>, %arg6: memref<16x128xf32, #tpu.memory_space<vmem>>) attributes {dimension_semantics = [#tpu.dimension_semantics<parallel>], iteration_bounds = array<i64: 1>, scalar_prefetch = 0 : i64, scratch_operands = 0 : i64, tpu.core_type = #tpu.core_type<tc>, window_params = [{transform_indices = @transform_0, window_bounds = array<i64: 16, 128>}, {pipeline_mode = #tpu.pipeline_mode<synchronous>, transform_indices = @transform_1, window_bounds = array<i64: 128, 128>}, {pipeline_mode = #tpu.pipeline_mode<synchronous>, transform_indices = @transform_2, window_bounds = array<i64: 1, 128>}, {pipeline_mode = #tpu.pipeline_mode<synchronous>, transform_indices = @transform_3, window_bounds = array<i64: 128, 128>}, {pipeline_mode = #tpu.pipeline_mode<synchronous>, transform_indices = @transform_4, window_bounds = array<i64: 1, 128>}, {transform_indices = @transform_5, window_bounds = array<i64: 16, 128>}]} {
    %c0 = arith.constant 0 : index
    %c0_0 = arith.constant 0 : index
    %0 = vector.load %arg1[%c0, %c0_0] : memref<16x128xf32, #tpu.memory_space<vmem>>, vector<16x128xf32>
    %1 = arith.truncf %0 : vector<16x128xf32> to vector<16x128xbf16>
    %c0_1 = arith.constant 0 : index
    %c0_2 = arith.constant 0 : index
    %2 = vector.load %arg2[%c0_1, %c0_2] : memref<128x128xbf16, #tpu.memory_space<vmem>>, vector<128x128xbf16>
    %cst = arith.constant dense<0.000000e+00> : vector<16x128xf32>
    %3 = tpu.matmul %1, %2, %cst {dimension_numbers = #tpu.dot_dimension_numbers<[1], [0], [0], [1], [0, 0, 1, 1], [], []>} : vector<16x128xbf16>, vector<128x128xbf16>, vector<16x128xf32> -> vector<16x128xf32>
    %c0_3 = arith.constant 0 : index
    %c0_4 = arith.constant 0 : index
    %4 = vector.load %arg3[%c0_3, %c0_4] : memref<1x128xf32, #tpu.memory_space<vmem>>, vector<1x128xf32>
    %5 = vector.broadcast %4 : vector<1x128xf32> to vector<16x128xf32>
    %6 = arith.addf %3, %5 : vector<16x128xf32>
    %cst_5 = arith.constant 0.000000e+00 : f32
    %7 = vector.broadcast %cst_5 : f32 to vector<16x128xf32>
    %8 = arith.maximumf %6, %7 : vector<16x128xf32>
    %9 = arith.truncf %8 : vector<16x128xf32> to vector<16x128xbf16>
    %c0_6 = arith.constant 0 : index
    %c0_7 = arith.constant 0 : index
    %10 = vector.load %arg4[%c0_6, %c0_7] : memref<128x128xbf16, #tpu.memory_space<vmem>>, vector<128x128xbf16>
    %cst_8 = arith.constant dense<0.000000e+00> : vector<16x128xf32>
    %11 = tpu.matmul %9, %10, %cst_8 {dimension_numbers = #tpu.dot_dimension_numbers<[1], [0], [0], [1], [0, 0, 1, 1], [], []>} : vector<16x128xbf16>, vector<128x128xbf16>, vector<16x128xf32> -> vector<16x128xf32>
    %c0_9 = arith.constant 0 : index
    %c0_10 = arith.constant 0 : index
    %12 = vector.load %arg5[%c0_9, %c0_10] : memref<1x128xf32, #tpu.memory_space<vmem>>, vector<1x128xf32>
    %13 = vector.broadcast %12 : vector<1x128xf32> to vector<16x128xf32>
    %14 = arith.addf %11, %13 : vector<16x128xf32>
    %c0_11 = arith.constant 0 : index
    %c0_12 = arith.constant 0 : index
    %15 = vector.load %arg6[%c0_11, %c0_12] : memref<16x128xf32, #tpu.memory_space<vmem>>, vector<16x128xf32>
    tpu.vector_store %arg6[%c0_11, %c0_12], %14 {strides = array<i32>} : memref<16x128xf32, #tpu.memory_space<vmem>>, vector<16x128xf32>,
    return
  }
  func.func @transform_0(%arg0: i32) -> (i32, i32) {
    %c0_i32 = arith.constant 0 : i32
    %c0_i32_0 = arith.constant 0 : i32
    return %arg0, %c0_i32 : i32, i32
  }
  func.func @transform_1(%arg0: i32) -> (i32, i32) {
    %c0_i32 = arith.constant 0 : i32
    %c0_i32_0 = arith.constant 0 : i32
    %c0_i32_1 = arith.constant 0 : i32
    return %c0_i32, %c0_i32_0 : i32, i32
  }
  func.func @transform_2(%arg0: i32) -> (i32, i32) {
    %c0_i32 = arith.constant 0 : i32
    %c0_i32_0 = arith.constant 0 : i32
    %c0_i32_1 = arith.constant 0 : i32
    return %c0_i32, %c0_i32_0 : i32, i32
  }
  func.func @transform_3(%arg0: i32) -> (i32, i32) {
    %c0_i32 = arith.constant 0 : i32
    %c0_i32_0 = arith.constant 0 : i32
    %c0_i32_1 = arith.constant 0 : i32
    return %c0_i32, %c0_i32_0 : i32, i32
  }
  func.func @transform_4(%arg0: i32) -> (i32, i32) {
    %c0_i32 = arith.constant 0 : i32
    %c0_i32_0 = arith.constant 0 : i32
    %c0_i32_1 = arith.constant 0 : i32
    return %c0_i32, %c0_i32_0 : i32, i32
  }
  func.func @transform_5(%arg0: i32) -> (i32, i32) {
    %c0_i32 = arith.constant 0 : i32
    %c0_i32_0 = arith.constant 0 : i32
    return %arg0, %c0_i32 : i32, i32
  }
}

</mosaic_0001>

<llo_original>
// kernel: positionwise_feedforward.1
$region0: #{positionwise_feedforward.1}
  #allocation0 [shape = 'u32[]', space=smem, size = 0x4, offset = 0x4, fixed_abs, tag = 'smem constant byte address 0x4 - core index']
  #allocation1 [shape = 'u32[144,128]{1,0:T(1,128)}', space=vmem, size = 0x12000, scoped, tag = 'internal scratch']
  %s0 = inlined_call_operand.vmem [shape: f32[16,128], index: 0, kind: input, shape index: {}]
  %s1 = inlined_call_operand.vmem [shape: bf16[128,128], index: 1, kind: input, shape index: {}]
  %s2 = inlined_call_operand.vmem [shape: f32[1,128], index: 2, kind: input, shape index: {}]
  %s3 = inlined_call_operand.vmem [shape: bf16[128,128], index: 3, kind: input, shape index: {}]
  %s4 = inlined_call_operand.vmem [shape: f32[1,128], index: 4, kind: input, shape index: {}]
  %s5 = inlined_call_operand.vmem [shape: f32[16,128], index: 5, kind: output, shape index: {}]
  %s6 = sld [smem:[#allocation0]]
  $region30: #{positionwise_feedforward.1} parent=0
    _
  %s8 = ssub.s32 1, %s6
  %s9 = scalar_select 0, %s8, %s6
  // Predicated region
  $region2: #{positionwise_feedforward.1} parent=0 // pred_check
    _
  $region3: #{positionwise_feedforward.1} parent=0 // pred_check_branch
    %11 = sbr.rel (0) target = $region5
  $region4: #{positionwise_feedforward.1} parent=0 // pred_region
    _
  $region5: #{positionwise_feedforward.1} parent=0 // pred_fallthru
    _
  // Predicated region
  $region6: #{positionwise_feedforward.1} parent=0 // pred_check
    _
  $region7: #{positionwise_feedforward.1} parent=0 // pred_check_branch
    %13 = sbr.rel (0) target = $region9
  $region8: #{positionwise_feedforward.1} parent=0 // pred_region
    _
  $region9: #{positionwise_feedforward.1} parent=0 // pred_fallthru
    _
  // Predicated region
  $region10: #{positionwise_feedforward.1} parent=0 // pred_check
    _
  $region11: #{positionwise_feedforward.1} parent=0 // pred_check_branch
    %15 = sbr.rel (0) target = $region13
  $region12: #{positionwise_feedforward.1} parent=0 // pred_region
    _
  $region13: #{positionwise_feedforward.1} parent=0 // pred_fallthru
    _
  // Predicated region
  $region14: #{positionwise_feedforward.1} parent=0 // pred_check
    _
  $region15: #{positionwise_feedforward.1} parent=0 // pred_check_branch
    %17 = sbr.rel (0) target = $region17
  $region16: #{positionwise_feedforward.1} parent=0 // pred_region
    _
  $region17: #{positionwise_feedforward.1} parent=0 // pred_fallthru
    _
  // Predicated region
  $region18: #{positionwise_feedforward.1} parent=0 // pred_check
    _
  $region19: #{positionwise_feedforward.1} parent=0 // pred_check_branch
    %19 = sbr.rel (0) target = $region21
  $region20: #{positionwise_feedforward.1} parent=0 // pred_region
    _
  $region21: #{positionwise_feedforward.1} parent=0 // pred_fallthru
    _
  %v21 = vld [vmem:[%s0] sm:$0xff]
  %v22 = vld [vmem:[%s0 + $0x8] sm:$0xff]
  %v23 = vpack.c.bf16 %v22, %v21
  %v24 = vld [vmem:[%s1] sm:$0xf]
  %v25 = vld [vmem:[%s1 + $0x4] sm:$0xf]
  %v26 = vld [vmem:[%s1 + $0x8] sm:$0xf]
  %v27 = vld [vmem:[%s1 + $0xc] sm:$0xf]
  %v28 = vld [vmem:[%s1 + $0x10] sm:$0xf]
  %v29 = vld [vmem:[%s1 + $0x14] sm:$0xf]
  %v30 = vld [vmem:[%s1 + $0x18] sm:$0xf]
  %v31 = vld [vmem:[%s1 + $0x1c] sm:$0xf]
  %v32 = vld [vmem:[%s1 + $0x20] sm:$0xf]
  %v33 = vld [vmem:[%s1 + $0x24] sm:$0xf]
  %v34 = vld [vmem:[%s1 + $0x28] sm:$0xf]
  %v35 = vld [vmem:[%s1 + $0x2c] sm:$0xf]
  %v36 = vld [vmem:[%s1 + $0x30] sm:$0xf]
  %v37 = vld [vmem:[%s1 + $0x34] sm:$0xf]
  %v38 = vld [vmem:[%s1 + $0x38] sm:$0xf]
  %v39 = vld [vmem:[%s1 + $0x3c] sm:$0xf]
  %v40 = vld [vmem:[%s2] sm:$0x1]
  %v42 = vlaneseq
  %v43 = vshrl.u32 %v42, 7
  %v44 = vsub.s32 0, %v43
  %v45 = vrot.slane %v40, %v44
  %v63 = vunpack.c.l.b16 %v24
  %v64 = vunpack.c.l.b16 %v25
  %v65 = vunpack.c.l.b16 %v26
  %v66 = vunpack.c.l.b16 %v27
  %v67 = vunpack.c.l.b16 %v28
  %v68 = vunpack.c.l.b16 %v29
  %v69 = vunpack.c.l.b16 %v30
  %v70 = vunpack.c.l.b16 %v31
  %v71 = vunpack.c.l.b16 %v32
  %v72 = vunpack.c.l.b16 %v33
  %v73 = vunpack.c.l.b16 %v34
  %v74 = vunpack.c.l.b16 %v35
  %v75 = vunpack.c.l.b16 %v36
  %v76 = vunpack.c.l.b16 %v37
  %v77 = vunpack.c.l.b16 %v38
  %v78 = vunpack.c.l.b16 %v39
  %v79 = vpack.c.b16 %v64, %v63
  %v80 = vpack.c.b16 %v66, %v65
  %v81 = vpack.c.b16 %v68, %v67
  %v82 = vpack.c.b16 %v70, %v69
  %v83 = vpack.c.b16 %v72, %v71
  %v84 = vpack.c.b16 %v74, %v73
  %v85 = vpack.c.b16 %v76, %v75
  %v86 = vpack.c.b16 %v78, %v77
  %95 = vmatprep.subr.bf16.mxu0 0
  %96 = vmatpush1.bf16.msra.mxu0 %v86
  %97 = vmatprep.subr.bf16.mxu0 0
  %98 = vmatpush1.bf16.msra.mxu0 %v85
  %99 = vmatprep.subr.bf16.mxu0 0
  %100 = vmatpush1.bf16.msra.mxu0 %v84
  %101 = vmatprep.subr.bf16.mxu0 0
  %102 = vmatpush1.bf16.msra.mxu0 %v83
  %103 = vmatprep.subr.bf16.mxu0 0
  %104 = vmatpush1.bf16.msra.mxu0 %v82
  %105 = vmatprep.subr.bf16.mxu0 0
  %106 = vmatpush1.bf16.msra.mxu0 %v81
  %107 = vmatprep.subr.bf16.mxu0 0
  %108 = vmatpush1.bf16.msra.mxu0 %v80
  %109 = vmatprep.subr.bf16.mxu0 0
  %110 = vmatpush1.bf16.msra.mxu0 %v79
  %111 = vmatprep.subr.bf16.mxu0 0
  %112 = vmatpush2.bf16.msra.mxu0 0
  %113 = vmatprep.subr.bf16.mxu0 0
  %114 = vmatpush2.bf16.msra.mxu0 0
  %115 = vmatprep.subr.bf16.mxu0 0
  %116 = vmatpush2.bf16.msra.mxu0 0
  %117 = vmatprep.subr.bf16.mxu0 0
  %118 = vmatpush2.bf16.msra.mxu0 0
  %119 = vmatprep.subr.bf16.mxu0 0
  %120 = vmatpush2.bf16.msra.mxu0 0
  %121 = vmatprep.subr.bf16.mxu0 0
  %122 = vmatpush2.bf16.msra.mxu0 0
  %123 = vmatprep.subr.bf16.mxu0 0
  %124 = vmatpush2.bf16.msra.mxu0 0
  %125 = vmatprep.subr.bf16.mxu0 0
  %126 = vmatpush2.bf16.msra.mxu0 0
  %127 = vmatprep.mubr.bf16.mxu0 0
  %128 = vmatmul.mubr.bf16.gmra.mxu0 %v23
  %v129 = vpop.f32.mrf.mxu0
  %v130 = vadd.f32 %v45, %v129
  %v131 = vpop.f32.mrf.mxu0
  %v132 = vpop.f32.mrf.mxu0
  %v133 = vadd.f32 %v45, %v132
  %v134 = vpop.f32.mrf.mxu0
  %135 = vdwg.mxu0
  %v136 = vmax.f32 %v130, 0.0
  %v137 = vmax.f32 %v133, 0.0
  %v138 = vpack.c.bf16 %v137, %v136
  %v139 = vld [vmem:[%s3] sm:$0xf]
  %v140 = vld [vmem:[%s3 + $0x4] sm:$0xf]
  %v141 = vld [vmem:[%s3 + $0x8] sm:$0xf]
  %v142 = vld [vmem:[%s3 + $0xc] sm:$0xf]
  %v143 = vld [vmem:[%s3 + $0x10] sm:$0xf]
  %v144 = vld [vmem:[%s3 + $0x14] sm:$0xf]
  %v145 = vld [vmem:[%s3 + $0x18] sm:$0xf]
  %v146 = vld [vmem:[%s3 + $0x1c] sm:$0xf]
  %v147 = vld [vmem:[%s3 + $0x20] sm:$0xf]
  %v148 = vld [vmem:[%s3 + $0x24] sm:$0xf]
  %v149 = vld [vmem:[%s3 + $0x28] sm:$0xf]
  %v150 = vld [vmem:[%s3 + $0x2c] sm:$0xf]
  %v151 = vld [vmem:[%s3 + $0x30] sm:$0xf]
  %v152 = vld [vmem:[%s3 + $0x34] sm:$0xf]
  %v153 = vld [vmem:[%s3 + $0x38] sm:$0xf]
  %v154 = vld [vmem:[%s3 + $0x3c] sm:$0xf]
  %v155 = vld [vmem:[%s4] sm:$0x1]
  %v157 = vlaneseq
  %v158 = vshrl.u32 %v157, 7
  %v159 = vsub.s32 0, %v158
  %v160 = vrot.slane %v155, %v159
  %v178 = vunpack.c.l.b16 %v139
  %v179 = vunpack.c.l.b16 %v140
  %v180 = vunpack.c.l.b16 %v141
  %v181 = vunpack.c.l.b16 %v142
  %v182 = vunpack.c.l.b16 %v143
  %v183 = vunpack.c.l.b16 %v144
  %v184 = vunpack.c.l.b16 %v145
  %v185 = vunpack.c.l.b16 %v146
  %v186 = vunpack.c.l.b16 %v147
  %v187 = vunpack.c.l.b16 %v148
  %v188 = vunpack.c.l.b16 %v149
  %v189 = vunpack.c.l.b16 %v150
  %v190 = vunpack.c.l.b16 %v151
  %v191 = vunpack.c.l.b16 %v152
  %v192 = vunpack.c.l.b16 %v153
  %v193 = vunpack.c.l.b16 %v154
  %v194 = vpack.c.b16 %v179, %v178
  %v195 = vpack.c.b16 %v181, %v180
  %v196 = vpack.c.b16 %v183, %v182
  %v197 = vpack.c.b16 %v185, %v184
  %v198 = vpack.c.b16 %v187, %v186
  %v199 = vpack.c.b16 %v189, %v188
  %v200 = vpack.c.b16 %v191, %v190
  %v201 = vpack.c.b16 %v193, %v192
  %210 = vmatprep.subr.bf16.mxu0 0
  %211 = vmatpush1.bf16.msra.mxu0 %v201
  %212 = vmatprep.subr.bf16.mxu0 0
  %213 = vmatpush1.bf16.msra.mxu0 %v200
  %214 = vmatprep.subr.bf16.mxu0 0
  %215 = vmatpush1.bf16.msra.mxu0 %v199
  %216 = vmatprep.subr.bf16.mxu0 0
  %217 = vmatpush1.bf16.msra.mxu0 %v198
  %218 = vmatprep.subr.bf16.mxu0 0
  %219 = vmatpush1.bf16.msra.mxu0 %v197
  %220 = vmatprep.subr.bf16.mxu0 0
  %221 = vmatpush1.bf16.msra.mxu0 %v196
  %222 = vmatprep.subr.bf16.mxu0 0
  %223 = vmatpush1.bf16.msra.mxu0 %v195
  %224 = vmatprep.subr.bf16.mxu0 0
  %225 = vmatpush1.bf16.msra.mxu0 %v194
  %226 = vmatprep.subr.bf16.mxu0 0
  %227 = vmatpush2.bf16.msra.mxu0 0
  %228 = vmatprep.subr.bf16.mxu0 0
  %229 = vmatpush2.bf16.msra.mxu0 0
  %230 = vmatprep.subr.bf16.mxu0 0
  %231 = vmatpush2.bf16.msra.mxu0 0
  %232 = vmatprep.subr.bf16.mxu0 0
  %233 = vmatpush2.bf16.msra.mxu0 0
  %234 = vmatprep.subr.bf16.mxu0 0
  %235 = vmatpush2.bf16.msra.mxu0 0
  %236 = vmatprep.subr.bf16.mxu0 0
  %237 = vmatpush2.bf16.msra.mxu0 0
  %238 = vmatprep.subr.bf16.mxu0 0
  %239 = vmatpush2.bf16.msra.mxu0 0
  %240 = vmatprep.subr.bf16.mxu0 0
  %241 = vmatpush2.bf16.msra.mxu0 0
  %242 = vmatprep.mubr.bf16.mxu0 0
  %243 = vmatmul.mubr.bf16.gmra.mxu0 %v138
  %v244 = vpop.f32.mrf.mxu0
  %v245 = vadd.f32 %v160, %v244
  %v246 = vpop.f32.mrf.mxu0
  %v247 = vpop.f32.mrf.mxu0
  %v248 = vadd.f32 %v160, %v247
  %v249 = vpop.f32.mrf.mxu0
  %250 = vdwg.mxu0
  %251 = vst [vmem:[%s5] sm:$0xff] %v245
  %252 = vst [vmem:[%s5 + $0x8] sm:$0xff] %v248
  // Predicated region
  $region22: #{positionwise_feedforward.1} parent=0 // pred_check
    _
  $region23: #{positionwise_feedforward.1} parent=0 // pred_check_branch
    %254 = sbr.rel (0) target = $region25
  $region24: #{positionwise_feedforward.1} parent=0 // pred_region
    _
  $region25: #{positionwise_feedforward.1} parent=0 // pred_fallthru
    _
  // Predicated region
  $region26: #{positionwise_feedforward.1} parent=0 // pred_check
    _
  $region27: #{positionwise_feedforward.1} parent=0 // pred_check_branch
    %256 = sbr.rel (0) target = $region29
  $region28: #{positionwise_feedforward.1} parent=0 // pred_region
    _
  $region29: #{positionwise_feedforward.1} parent=0 // pred_fallthru
    _

</llo_original>
